<compile_context>
chip_gen: v5e
topology: v5e:2x2
jax: 0.10.0
libtpu: 0.0.40
codegen_flags: <defaults>
</compile_context>

<pallas_src>
import functools

import jax
import jax.numpy as jnp
from jax.experimental import pallas as pl
from jax.experimental.pallas import tpu as pltpu


def _round_up(x, m):
    return ((x + m - 1) // m) * m


def _round_down(x, m):
    return (x // m) * m


# -----------------------------------------------------------------------------
# Kernels
# -----------------------------------------------------------------------------
def _gs_rows_kernel(dist_ref, out_ref, *, coeff, start, step, resolution):
    # dist_ref: (tile_n, 1) f32   out_ref: (tile_n, resolution) out_dtype
    d = dist_ref[...]                                                   # (tile_n, 1)
    j = jax.lax.broadcasted_iota(jnp.int32, (1, resolution), 1).astype(jnp.float32)
    offset = start + step * j                                           # (1, R)
    diff = d - offset                                                   # (tile_n, R)
    out_ref[...] = jnp.exp(coeff * (diff * diff)).astype(out_ref.dtype)


def _gs_lanes_kernel(dist_ref, out_ref, *, coeff, start, step, resolution):
    # dist_ref: (1, tile_n) f32   out_ref: (resolution, tile_n) out_dtype (lane-dense)
    d = dist_ref[...]                                                   # (1, tile_n)
    r = jax.lax.broadcasted_iota(jnp.int32, (resolution, 1), 0).astype(jnp.float32)
    offset = start + step * r                                           # (R, 1)
    diff = d - offset                                                   # (R, tile_n)
    # TODO(synk): if EUP (the single exp slot) becomes the bottleneck after the
    # lane-dense + bf16 changes (possible on v7x), evaluate a bf16 exp on v6e/v7x.
    out_ref[...] = jnp.exp(coeff * (diff * diff)).astype(out_ref.dtype)


# -----------------------------------------------------------------------------
# Wrapper
# -----------------------------------------------------------------------------
def _pick_tile(n, requested, multiple):
    """Clamp tile to the problem size; keep >= 2 grid steps so v7x's 2 TCs both work."""
    if n <= multiple:
        return n
    tile = _round_up(requested, multiple)
    tile = min(tile, _round_down(n, multiple))
    if tile >= n:  # whole problem in one step -> split for megacore
        tile = min(_round_up(pl.cdiv(n, 2), multiple), _round_down(n, multiple))
    return max(multiple, tile)


def _compiler_params(vmem_bytes_needed):
    kwargs = dict(dimension_semantics=("parallel",))
    # v7x: 64 MiB physical VMEM, 32 MiB default scoped.  Raise only if needed.
    if vmem_bytes_needed > 32 * 1024 * 1024:
        kwargs["vmem_limit_bytes"] = int(min(vmem_bytes_needed + (4 << 20),
                                             56 * 1024 * 1024))
    return pltpu.CompilerParams(**kwargs)


def gaussian_smearing(dist, *, start=0.0, stop=5.0, resolution=50, width=0.05,
                      transposed=False, tile_n=None, out_dtype=jnp.float32):
    """Pallas implementation of GaussianSmearing.forward.

    transposed=False (default): returns (N, resolution), exact module layout.
    transposed=True:  returns (resolution, N), lane-dense production layout
                      (unmasked stores, dense output DMA, no (N,1) staging array).
    out_dtype: jnp.bfloat16 halves HBM write traffic on this write-bound op
               (math stays f32; cast only at the store).
    """
    assert dist.ndim == 1
    n = dist.shape[0]
    out_itemsize = int(jnp.dtype(out_dtype).itemsize)

    coeff = -0.5 / ((stop - start) * width) ** 2
    step = (stop - start) / (resolution - 1) if resolution > 1 else 0.0

    cost = pl.CostEstimate(
        flops=3 * n * resolution,
        transcendentals=n * resolution,
        bytes_accessed=int(n * 4 + n * resolution * out_itemsize))

    if transposed:
        # --- lane-dense (resolution, N) path --------------------------------
        tile = _pick_tile(n, 16384 if tile_n is None else tile_n, 128)

        def vmem_need(t):  # double-buffered in + out, with (8,128)-tile padding
            return (2 * _round_up(1, 8) * t * 4
                    + 2 * _round_up(resolution, 16) * t * out_itemsize)

        while vmem_need(tile) > 48 * 1024 * 1024 and tile > 128:
            tile = max(128, _round_down(tile // 2, 128))

        kern = functools.partial(_gs_lanes_kernel, coeff=float(coeff),
                                 start=float(start), step=float(step),
                                 resolution=resolution)
        dist_in = dist.astype(jnp.float32).reshape(1, n)  # no lane-padded staging
        return pl.pallas_call(
            kern,
            out_shape=jax.ShapeDtypeStruct((resolution, n), out_dtype),
            grid_spec=pltpu.PrefetchScalarGridSpec(
                num_scalar_prefetch=0,
                grid=(pl.cdiv(n, tile),),
                in_specs=[pl.BlockSpec((1, tile), lambda i: (0, i))],
                out_specs=pl.BlockSpec((resolution, tile), lambda i: (0, i)),
            ),
            compiler_params=_compiler_params(vmem_need(tile)),
            cost_estimate=cost,
        )(dist_in)

    # --- module-parity (N, resolution) path ---------------------------------
    # Stores are inherently masked here (resolution=50 < 128 lanes); prefer
    # transposed=True whenever the consumer can take (resolution, N).
    tile = _pick_tile(n, 8192 if tile_n is None else tile_n, 8)

    def vmem_need(t):  # both blocks lane-pad to 128 in VMEM
        return 2 * t * 128 * 4 + 2 * t * 128 * out_itemsize

    while vmem_need(tile) > 48 * 1024 * 1024 and tile > 8:
        tile = max(8, _round_down(tile // 2, 8))

    kern = functools.partial(_gs_rows_kernel, coeff=float(coeff),
                             start=float(start), step=float(step),
                             resolution=resolution)
    # NOTE: the (N, 1) input is lane-padded in HBM; only the transposed path
    # avoids this staging cost entirely.
    dist_in = dist.astype(jnp.float32).reshape(n, 1)
    return pl.pallas_call(
        kern,
        out_shape=jax.ShapeDtypeStruct((n, resolution), out_dtype),
        grid_spec=pltpu.PrefetchScalarGridSpec(
            num_scalar_prefetch=0,
            grid=(pl.cdiv(n, tile),),
            in_specs=[pl.BlockSpec((tile, 1), lambda i: (i, 0))],
            out_specs=pl.BlockSpec((tile, resolution), lambda i: (i, 0)),
        ),
        compiler_params=_compiler_params(vmem_need(tile)),
        cost_estimate=cost,
    )(dist_in)


def gaussian_smearing_ref(dist, *, start=0.0, stop=5.0, resolution=50, width=0.05):
    offset = jnp.linspace(start, stop, resolution, dtype=jnp.float32)
    coeff = -0.5 / ((stop - start) * width) ** 2
    d = dist[:, None] - offset[None, :]
    return jnp.exp(coeff * d * d)


if __name__ == "__main__":
    key = jax.random.PRNGKey(0)

    # 1) Module-parity layout (N, resolution), f32.
    n = 200
    dist = jax.random.uniform(key, (n,), dtype=jnp.float32, minval=0.0, maxval=5.0)
    out = jax.block_until_ready(gaussian_smearing(dist))
    ref = gaussian_smearing_ref(dist)
    assert out.shape == (n, 50)
    assert jnp.allclose(out, ref, atol=1e-5, rtol=1e-5)

    # 2) Uneven edge count + explicit small tile -> exercises the masked tail block.
    n2 = 77
    dist2 = jax.random.uniform(jax.random.PRNGKey(0), (n2,), dtype=jnp.float32,
                               minval=0.0, maxval=5.0)
    out2 = jax.block_until_ready(gaussian_smearing(dist2, tile_n=32))
    assert out2.shape == (n2, 50)
    assert jnp.allclose(out2, gaussian_smearing_ref(dist2), atol=1e-5, rtol=1e-5)

    # 3) Lane-dense production layout (resolution, N), f32.
    n3 = 300
    dist3 = jax.random.uniform(jax.random.PRNGKey(0), (n3,), dtype=jnp.float32,
                               minval=0.0, maxval=5.0)
    out3 = jax.block_until_ready(gaussian_smearing(dist3, transposed=True))
    ref3 = gaussian_smearing_ref(dist3).T
    assert out3.shape == (50, n3)
    assert jnp.allclose(out3, ref3, atol=1e-5, rtol=1e-5)

    # 4) Lane-dense + bf16 output (fast path; exp output is in (0,1] so ~0.4% rel err).
    out4 = jax.block_until_ready(
        gaussian_smearing(dist3, transposed=True, out_dtype=jnp.bfloat16))
    assert out4.shape == (50, n3)
    assert jnp.allclose(out4.astype(jnp.float32), ref3, atol=1e-2, rtol=1e-2)

    print("KERNEL_OK")
</pallas_src>

<mosaic_0001>
module attributes {stable_mosaic.version = 11 : i64} {
  func.func @_gs_rows_kernel(%arg0: i32, %arg1: memref<104x1xf32, #tpu.memory_space<vmem>>, %arg2: memref<104x50xf32, #tpu.memory_space<vmem>>) attributes {dimension_semantics = [#tpu.dimension_semantics<parallel>], iteration_bounds = array<i64: 2>, scalar_prefetch = 0 : i64, scratch_operands = 0 : i64, tpu.core_type = #tpu.core_type<tc>, window_params = [{transform_indices = @transform_0, window_bounds = array<i64: 104, 1>}, {transform_indices = @transform_1, window_bounds = array<i64: 104, 50>}]} {
    %c0 = arith.constant 0 : index
    %c0_0 = arith.constant 0 : index
    %0 = vector.load %arg1[%c0, %c0_0] : memref<104x1xf32, #tpu.memory_space<vmem>>, vector<104x1xf32>
    %1 = tpu.iota {dimensions = array<i32: 1>} : vector<1x50xi32>
    %2 = arith.sitofp %1 : vector<1x50xi32> to vector<1x50xf32>
    %cst = arith.constant 0.10204082 : f32
    %3 = vector.broadcast %cst : f32 to vector<1x50xf32>
    %4 = arith.mulf %3, %2 : vector<1x50xf32>
    %cst_1 = arith.constant 0.000000e+00 : f32
    %5 = vector.broadcast %cst_1 : f32 to vector<1x50xf32>
    %6 = arith.addf %5, %4 : vector<1x50xf32>
    %7 = vector.broadcast %0 : vector<104x1xf32> to vector<104x50xf32>
    %8 = vector.broadcast %6 : vector<1x50xf32> to vector<104x50xf32>
    %9 = arith.subf %7, %8 : vector<104x50xf32>
    %10 = arith.mulf %9, %9 : vector<104x50xf32>
    %cst_2 = arith.constant -8.000000e+00 : f32
    %11 = vector.broadcast %cst_2 : f32 to vector<104x50xf32>
    %12 = arith.mulf %11, %10 : vector<104x50xf32>
    %13 = math.exp %12 : vector<104x50xf32>
    %c0_3 = arith.constant 0 : index
    %c0_4 = arith.constant 0 : index
    %14 = vector.load %arg2[%c0_3, %c0_4] : memref<104x50xf32, #tpu.memory_space<vmem>>, vector<104x50xf32>
    tpu.vector_store %arg2[%c0_3, %c0_4], %13 {strides = array<i32>} : memref<104x50xf32, #tpu.memory_space<vmem>>, vector<104x50xf32>,
    return
  }
  func.func @transform_0(%arg0: i32) -> (i32, i32) {
    %c0_i32 = arith.constant 0 : i32
    %c0_i32_0 = arith.constant 0 : i32
    return %arg0, %c0_i32 : i32, i32
  }
  func.func @transform_1(%arg0: i32) -> (i32, i32) {
    %c0_i32 = arith.constant 0 : i32
    %c0_i32_0 = arith.constant 0 : i32
    return %arg0, %c0_i32 : i32, i32
  }
}

</mosaic_0001>

<llo_original>
// kernel: tpu_custom_call.1
$region0: #{tpu_custom_call.1}
  #allocation0 [shape = 'u32[]', space=smem, size = 0x4, offset = 0x4, fixed_abs, tag = 'smem constant byte address 0x4 - core index']
  #allocation1 [shape = 'u32[72,128]{1,0:T(1,128)}', space=vmem, size = 0x9000, scoped, tag = 'internal scratch']
  %s0 = inlined_call_operand.vmem [shape: f32[200,1], index: 0, kind: input, shape index: {}]
  %s1 = inlined_call_operand.vmem [shape: f32[200,50], index: 1, kind: output, shape index: {}]
  %s2 = sld [smem:[#allocation0]]
  $region85: #{tpu_custom_call.1} parent=0
    _
  %s4 = ssub.s32 1, %s2
  %s5 = scalar_select 0, %s4, %s2
  $region1: #{tpu_custom_call.1} parent=0
    #allocation2 [shape = 'u8[106496]{0}', space=vmem, size = 0x1a000, scoped, tag = 'output window, operand 0']
    loop: start=0, step=1, limit=4
    $region2: #{tpu_custom_call.1} parent=1 // loop_pre_header
      _
    $region3: #{tpu_custom_call.1} parent=1 // loop_header
      %s7 = sphi 0, %s11
      %p8 = scmp.ge.s32.totalorder %s7, 4
      %s17 = sphi 0, %s19
      %s20 = sphi 0, %s17
      %s21 = sphi 0, %s20
      %s37 = sphi 0, %s21
      %s43 = sphi 0, %s45
      %s46 = sphi 0, %s43
      %s47 = sphi 0, %s46
      %s63 = sphi 0, %s47
    $region4: #{tpu_custom_call.1} parent=1 // loop_header_branch
      %10 = sbr.rel (%p8) target = $region8
    $region5: #{tpu_custom_call.1} parent=1 // loop_body
      %s12 = ssub.s32 %s7, 1
      %s13 = ssub.s32 %s7, 2
      %s14 = sadd.s32 %s7, 1
      %s15 = ssub.s32 %s7, %s14
      %p16 = scmp.eq.s32.totalorder %s15, 0
      %s18 = sadd.s32 %s17, 1
      %s19 = scalar_select %p16, %s17, %s18
      %p22 = pneg %p16
      %p23 = scmp.eq.s32.totalorder %s7, 1
      %p24 = por %p22, %p23
      %p25 = scmp.ne.s32.totalorder %s17, %s20
      %p26 = scmp.eq.s32.totalorder %s7, 0
      %p27 = por %p25, %p26
      %p28 = scmp.ne.s32.totalorder %s17, %s20
      %p29 = scmp.eq.s32.totalorder %s12, 1
      %p30 = por %p28, %p29
      %p31 = scmp.ne.s32.totalorder %s20, %s21
      %p32 = scmp.eq.s32.totalorder %s12, 0
      %p33 = por %p31, %p32
      %p34 = scmp.ne.s32.totalorder %s20, %s21
      %p35 = scmp.eq.s32.totalorder %s13, 1
      %p36 = por %p34, %p35
      %p38 = scmp.ne.s32.totalorder %s21, %s37
      %p39 = scmp.eq.s32.totalorder %s13, 0
      %p40 = por %p38, %p39
      %s41 = ssub.s32 %s7, %s14
      %p42 = scmp.eq.s32.totalorder %s41, 0
      %s44 = sadd.s32 %s43, 1
      %s45 = scalar_select %p42, %s43, %s44
      %p48 = pneg %p42
      %p49 = scmp.eq.s32.totalorder %s7, 1
      %p50 = por %p48, %p49
      %p51 = scmp.ne.s32.totalorder %s43, %s46
      %p52 = scmp.eq.s32.totalorder %s7, 0
      %p53 = por %p51, %p52
      %p54 = scmp.ne.s32.totalorder %s43, %s46
      %p55 = scmp.eq.s32.totalorder %s12, 1
      %p56 = por %p54, %p55
      %p57 = scmp.ne.s32.totalorder %s46, %s47
      %p58 = scmp.eq.s32.totalorder %s12, 0
      %p59 = por %p57, %p58
      %p60 = scmp.ne.s32.totalorder %s46, %s47
      %p61 = scmp.eq.s32.totalorder %s13, 1
      %p62 = por %p60, %p61
      %p64 = scmp.ne.s32.totalorder %s47, %s63
      %p65 = scmp.eq.s32.totalorder %s13, 0
      %p66 = por %p64, %p65
      %p67 = scmp.le.s32.totalorder 1, %s7
      %p68 = scmp.lt.s32.totalorder %s7, 3
      %p69 = pnand %p67, %p68
      %p70 = pneg %p69
      // Predicated region
      $region9: #{tpu_custom_call.1} parent=5 // pred_check
        _
      $region10: #{tpu_custom_call.1} parent=5 // pred_check_branch
        %72 = sbr.rel (%p69) target = $region12
      $region11: #{tpu_custom_call.1} parent=5 // pred_region
        %s73 = ssub.s32 %s7, 1
      $region12: #{tpu_custom_call.1} parent=5 // pred_fallthru
        _
      %p74 = scmp.lt.s32.totalorder %s7, 2
      // Predicated region
      $region13: #{tpu_custom_call.1} parent=5 // pred_check
        %p75 = pneg %p74
      $region14: #{tpu_custom_call.1} parent=5 // pred_check_branch
        %77 = sbr.rel (%p75) target = $region16
      $region15: #{tpu_custom_call.1} parent=5 // pred_region
        // Predicated region
        $region17: #{tpu_custom_call.1} parent=15 // pred_check
          %p78 = pneg %p27
        $region18: #{tpu_custom_call.1} parent=15 // pred_check_branch
          %80 = sbr.rel (%p78) target = $region20
        $region19: #{tpu_custom_call.1} parent=15 // pred_region
          %s81 = smul.u32 13, %s7
          %s82 = ssub.s32 25, %s81
          %p83 = scmp.lt.s32.totalorder %s82, 13
          %s84 = scalar_select %p83, %s82, 13
          %s85 = smul.u32 8, %s84
          %p86 = scmp.lt.s32.totalorder %s81, 24
          %s87 = scalar_select %p86, %s81, 24
          %s88 = smul.addr %s87, 8
          %s89 = scalar_lea.vmem %s0, %s88
          %s90 = smul.u32 13, %s7
          %s91 = ssub.s32 25, %s90
          %p92 = scmp.lt.s32.totalorder %s91, 13
          %s93 = scalar_select %p92, %s91, 13
          %s94 = smul.u32 8, %s93
        $region20: #{tpu_custom_call.1} parent=15 // pred_fallthru
          _
      $region16: #{tpu_custom_call.1} parent=5 // pred_fallthru
        _
      %p95 = scmp.le.s32.totalorder 1, %s7
      %p96 = scmp.lt.s32.totalorder %s7, 3
      %p97 = pnand %p95, %p96
      %p98 = pneg %p97
      // Predicated region
      $region21: #{tpu_custom_call.1} parent=5 // pred_check
        _
      $region22: #{tpu_custom_call.1} parent=5 // pred_check_branch
        %100 = sbr.rel (%p97) target = $region24
      $region23: #{tpu_custom_call.1} parent=5 // pred_region
        %s101 = ssub.s32 %s7, 1
        %s102 = smul.u32 13, %s12
        %s103 = ssub.s32 25, %s102
        %p104 = scmp.lt.s32.totalorder %s103, 13
        %s105 = scalar_select %p104, %s103, 13
        %s106 = smul.u32 8, %s105
        %p107 = scmp.lt.s32.totalorder %s102, 24
        %s108 = scalar_select %p107, %s102, 24
        %s109 = smul.addr %s108, 8
        %s110 = scalar_lea.vmem %s0, %s109
        %p111 = pneg %p33
        %p112 = pneg %p30
        %p113 = pneg %p59
        %p114 = pneg %p56
        %s115 = sand.u32 %s46, 1
        %s116 = sand.u32 %s46, 1
        %s117 = smul.addr %s116, 104
        %s118 = scalar_lea.vmem [#allocation2], %s117
        %s119 = smul.u32 13, %s12
        %s120 = ssub.s32 25, %s119
        %p121 = scmp.lt.s32.totalorder %s120, 13
        %s122 = scalar_select %p121, %s120, 13
        %s123 = smul.u32 8, %s122
        %p124 = scmp.lt.s32.totalorder %s119, 24
        %s125 = scalar_select %p124, %s119, 24
        %s126 = smul.addr %s125, 8
        %s127 = scalar_lea.vmem %s0, %s126
        %s128 = smul.u32 13, %s12
        %s129 = ssub.s32 25, %s128
        %p130 = scmp.lt.s32.totalorder %s129, 13
        %s131 = scalar_select %p130, %s129, 13
        %s132 = smul.u32 8, %s131
        %s133 = smul.u32 13, %s12
        %s134 = ssub.s32 25, %s133
        %p135 = scmp.lt.s32.totalorder %s134, 13
        %s136 = scalar_select %p135, %s134, 13
        %s137 = smul.u32 8, %s136
        %v138 = vld [vmem:[%s127] sm:$0xff]
        %v139 = vld [vmem:[%s127 + $0x8] sm:$0xff]
        %v140 = vld [vmem:[%s127 + $0x10] sm:$0xff]
        %v141 = vld [vmem:[%s127 + $0x18] sm:$0xff]
        %v142 = vld [vmem:[%s127 + $0x20] sm:$0xff]
        %v143 = vld [vmem:[%s127 + $0x28] sm:$0xff]
        %v144 = vld [vmem:[%s127 + $0x30] sm:$0xff]
        %v145 = vld [vmem:[%s127 + $0x38] sm:$0xff]
        %v146 = vld [vmem:[%s127 + $0x40] sm:$0xff]
        %v147 = vld [vmem:[%s127 + $0x48] sm:$0xff]
        %v148 = vld [vmem:[%s127 + $0x50] sm:$0xff]
        %v149 = vld [vmem:[%s127 + $0x58] sm:$0xff]
        %v150 = vld [vmem:[%s127 + $0x60] sm:$0xff]
        %v151 = vlaneseq
        %v152 = vand.u32 %v151, 127
        %v153 = vcvt.s32.f32 %v152
        %v154 = vmul.f32 %v153, 0.10204082
        %v155 = vadd.f32 %v154, 0.0
        %157 = vset.pattern.permute.xlu0 0
        %158 = vperm.xlu0 %157, %v138
        %v159 = vpop.permute.xlu0 %158
        %162 = vset.pattern.permute.xlu0 0
        %163 = vperm.xlu0 %162, %v139
        %v164 = vpop.permute.xlu0 %163
        %167 = vset.pattern.permute.xlu0 0
        %168 = vperm.xlu0 %167, %v140
        %v169 = vpop.permute.xlu0 %168
        %172 = vset.pattern.permute.xlu0 0
        %173 = vperm.xlu0 %172, %v141
        %v174 = vpop.permute.xlu0 %173
        %177 = vset.pattern.permute.xlu0 0
        %178 = vperm.xlu0 %177, %v142
        %v179 = vpop.permute.xlu0 %178
        %182 = vset.pattern.permute.xlu0 0
        %183 = vperm.xlu0 %182, %v143
        %v184 = vpop.permute.xlu0 %183
        %187 = vset.pattern.permute.xlu0 0
        %188 = vperm.xlu0 %187, %v144
        %v189 = vpop.permute.xlu0 %188
        %192 = vset.pattern.permute.xlu0 0
        %193 = vperm.xlu0 %192, %v145
        %v194 = vpop.permute.xlu0 %193
        %197 = vset.pattern.permute.xlu0 0
        %198 = vperm.xlu0 %197, %v146
        %v199 = vpop.permute.xlu0 %198
        %202 = vset.pattern.permute.xlu0 0
        %203 = vperm.xlu0 %202, %v147
        %v204 = vpop.permute.xlu0 %203
        %207 = vset.pattern.permute.xlu0 0
        %208 = vperm.xlu0 %207, %v148
        %v209 = vpop.permute.xlu0 %208
        %212 = vset.pattern.permute.xlu0 0
        %213 = vperm.xlu0 %212, %v149
        %v214 = vpop.permute.xlu0 %213
        %217 = vset.pattern.permute.xlu0 0
        %218 = vperm.xlu0 %217, %v150
        %v219 = vpop.permute.xlu0 %218
        %v221 = vsub.f32 %v159, %v155
        %v222 = vsub.f32 %v164, %v155
        %v223 = vsub.f32 %v169, %v155
        %v224 = vsub.f32 %v174, %v155
        %v225 = vsub.f32 %v179, %v155
        %v226 = vsub.f32 %v184, %v155
        %v227 = vsub.f32 %v189, %v155
        %v228 = vsub.f32 %v194, %v155
        %v229 = vsub.f32 %v199, %v155
        %v230 = vsub.f32 %v204, %v155
        %v231 = vsub.f32 %v209, %v155
        %v232 = vsub.f32 %v214, %v155
        %v233 = vsub.f32 %v219, %v155
        %v234 = vmul.f32 %v221, %v221
        %v235 = vmul.f32 %v222, %v222
        %v236 = vmul.f32 %v223, %v223
        %v237 = vmul.f32 %v224, %v224
        %v238 = vmul.f32 %v225, %v225
        %v239 = vmul.f32 %v226, %v226
        %v240 = vmul.f32 %v227, %v227
        %v241 = vmul.f32 %v228, %v228
        %v242 = vmul.f32 %v229, %v229
        %v243 = vmul.f32 %v230, %v230
        %v244 = vmul.f32 %v231, %v231
        %v245 = vmul.f32 %v232, %v232
        %v246 = vmul.f32 %v233, %v233
        %v247 = vmul.f32 %v234, -8.0
        %v248 = vmul.f32 %v235, -8.0
        %v249 = vmul.f32 %v236, -8.0
        %v250 = vmul.f32 %v237, -8.0
        %v251 = vmul.f32 %v238, -8.0
        %v252 = vmul.f32 %v239, -8.0
        %v253 = vmul.f32 %v240, -8.0
        %v254 = vmul.f32 %v241, -8.0
        %v255 = vmul.f32 %v242, -8.0
        %v256 = vmul.f32 %v243, -8.0
        %v257 = vmul.f32 %v244, -8.0
        %v258 = vmul.f32 %v245, -8.0
        %v259 = vmul.f32 %v246, -8.0
        %v260 = vmul.f32 %v247, 1.442695
        %v261 = vpow.pop %v260
        %v262 = vmul.f32 %v248, 1.442695
        %v263 = vpow.pop %v262
        %v264 = vmul.f32 %v249, 1.442695
        %v265 = vpow.pop %v264
        %v266 = vmul.f32 %v250, 1.442695
        %v267 = vpow.pop %v266
        %v268 = vmul.f32 %v251, 1.442695
        %v269 = vpow.pop %v268
        %v270 = vmul.f32 %v252, 1.442695
        %v271 = vpow.pop %v270
        %v272 = vmul.f32 %v253, 1.442695
        %v273 = vpow.pop %v272
        %v274 = vmul.f32 %v254, 1.442695
        %v275 = vpow.pop %v274
        %v276 = vmul.f32 %v255, 1.442695
        %v277 = vpow.pop %v276
        %v278 = vmul.f32 %v256, 1.442695
        %v279 = vpow.pop %v278
        %v280 = vmul.f32 %v257, 1.442695
        %v281 = vpow.pop %v280
        %v282 = vmul.f32 %v258, 1.442695
        %v283 = vpow.pop %v282
        %v284 = vmul.f32 %v259, 1.442695
        %v285 = vpow.pop %v284
        %vm286 = vcmask 408576
        %287 = vst.msk [vmem:[%s118] sm:$0xff] %vm286, %v261
        %288 = vst.msk [vmem:[%s118 + $0x8] sm:$0xff] %vm286, %v263
        %289 = vst.msk [vmem:[%s118 + $0x10] sm:$0xff] %vm286, %v265
        %290 = vst.msk [vmem:[%s118 + $0x18] sm:$0xff] %vm286, %v267
        %291 = vst.msk [vmem:[%s118 + $0x20] sm:$0xff] %vm286, %v269
        %292 = vst.msk [vmem:[%s118 + $0x28] sm:$0xff] %vm286, %v271
        %293 = vst.msk [vmem:[%s118 + $0x30] sm:$0xff] %vm286, %v273
        %294 = vst.msk [vmem:[%s118 + $0x38] sm:$0xff] %vm286, %v275
        %295 = vst.msk [vmem:[%s118 + $0x40] sm:$0xff] %vm286, %v277
        %296 = vst.msk [vmem:[%s118 + $0x48] sm:$0xff] %vm286, %v279
        %297 = vst.msk [vmem:[%s118 + $0x50] sm:$0xff] %vm286, %v281
        %298 = vst.msk [vmem:[%s118 + $0x58] sm:$0xff] %vm286, %v283
        %299 = vst.msk [vmem:[%s118 + $0x60] sm:$0xff] %vm286, %v285
        %s300 = sand.u32 %s46, 1
        %s301 = sand.u32 %s46, 1
        %s302 = smul.addr %s301, 104
        %s303 = scalar_lea.vmem [#allocation2], %s302
        // Predicated region
        $region25: #{tpu_custom_call.1} parent=23 // pred_check
          %p304 = pneg %p56
        $region26: #{tpu_custom_call.1} parent=23 // pred_check_branch
          %306 = sbr.rel (%p304) target = $region28
        $region27: #{tpu_custom_call.1} parent=23 // pred_region
          %s307 = smul.u32 13, %s12
          %s308 = ssub.s32 25, %s307
          %p309 = scmp.lt.s32.totalorder %s308, 13
          %s310 = scalar_select %p309, %s308, 13
          %s311 = smul.u32 8, %s310
          %p312 = scmp.ne.s32.totalorder 0, %s311
          %s313 = smul.addr %s307, 8
          %s314 = scalar_lea.vmem %s1, %s313
          // Predicated region
          $region29: #{tpu_custom_call.1} parent=27 // pred_check
            %p315 = pneg %p312
          $region30: #{tpu_custom_call.1} parent=27 // pred_check_branch
            %317 = sbr.rel (%p315) target = $region32
          $region31: #{tpu_custom_call.1} parent=27 // pred_region
            // Predicated region
            $region33: #{tpu_custom_call.1} parent=31 // pred_check
              _
            $region34: #{tpu_custom_call.1} parent=31 // pred_check_branch
              %319 = sbr.rel (0) target = $region36
            $region35: #{tpu_custom_call.1} parent=31 // pred_region
              // Predicated region
              $region55: #{tpu_custom_call.1} parent=35 // pred_check
                _
              $region56: #{tpu_custom_call.1} parent=35 // pred_check_branch
                %394 = sbr.rel (0) target = $region58
              $region57: #{tpu_custom_call.1} parent=35 // pred_region
                %s395 = sdiv.u32.pop %s310, 13
                %s396 = srem.u32.pop %s310, 13
                // While loop
                $region59: #{tpu_custom_call.1} parent=57 // loop_pre_header
                  _
                $region60: #{tpu_custom_call.1} parent=57 // loop_header
                  %s398 = sphi 0, %s400
                  %p399 = scmp.ge.s32.totalorder %s398, %s395
                  %s403 = sphi 0, %s434
                  %s404 = sphi %s303, %s437
                  %s405 = sphi %s314, %s438
                $region61: #{tpu_custom_call.1} parent=57 // loop_header_branch
                  %402 = sbr.rel (%p399) target = $region65
                $region62: #{tpu_custom_call.1} parent=57 // loop_body
                  %v406 = vld [vmem:[%s404] sm:$0xff]
                  %407 = vst [vmem:[%s405] sm:$0xff] %v406
                  %v408 = vld [vmem:[%s404 + $0x8] sm:$0xff]
                  %409 = vst [vmem:[%s405 + $0x8] sm:$0xff] %v408
                  %v410 = vld [vmem:[%s404 + $0x10] sm:$0xff]
                  %411 = vst [vmem:[%s405 + $0x10] sm:$0xff] %v410
                  %v412 = vld [vmem:[%s404 + $0x18] sm:$0xff]
                  %413 = vst [vmem:[%s405 + $0x18] sm:$0xff] %v412
                  %v414 = vld [vmem:[%s404 + $0x20] sm:$0xff]
                  %415 = vst [vmem:[%s405 + $0x20] sm:$0xff] %v414
                  %v416 = vld [vmem:[%s404 + $0x28] sm:$0xff]
                  %417 = vst [vmem:[%s405 + $0x28] sm:$0xff] %v416
                  %v418 = vld [vmem:[%s404 + $0x30] sm:$0xff]
                  %419 = vst [vmem:[%s405 + $0x30] sm:$0xff] %v418
                  %v420 = vld [vmem:[%s404 + $0x38] sm:$0xff]
                  %421 = vst [vmem:[%s405 + $0x38] sm:$0xff] %v420
                  %v422 = vld [vmem:[%s404 + $0x40] sm:$0xff]
                  %423 = vst [vmem:[%s405 + $0x40] sm:$0xff] %v422
                  %v424 = vld [vmem:[%s404 + $0x48] sm:$0xff]
                  %425 = vst [vmem:[%s405 + $0x48] sm:$0xff] %v424
                  %v426 = vld [vmem:[%s404 + $0x50] sm:$0xff]
                  %427 = vst [vmem:[%s405 + $0x50] sm:$0xff] %v426
                  %v428 = vld [vmem:[%s404 + $0x58] sm:$0xff]
                  %429 = vst [vmem:[%s405 + $0x58] sm:$0xff] %v428
                  %v430 = vld [vmem:[%s404 + $0x60] sm:$0xff]
                  %431 = vst [vmem:[%s405 + $0x60] sm:$0xff] %v430
                  %s432 = sadd.s32 1, %s403
                  %p433 = scmp.ge.s32.totalorder %s432, %s395
                  %s434 = scalar_select %p433, 0, %s432
                  %s435 = smul.u32 %s434, 104
                  %s436 = smul.u32 %s434, 104
                  %s437 = scalar_lea.vmem %s303, %s435 [#allocation2]
                  %s438 = scalar_lea.vmem %s314, %s436
                $region63: #{tpu_custom_call.1} parent=57 // loop_footer
                  %s400 = sadd.s32 %s398, 1
                $region64: #{tpu_custom_call.1} parent=57 // loop_footer_branch
                  %397 = sbr.rel target = $region60
                $region65: #{tpu_custom_call.1} parent=57 // loop_exit
                  _
                %s439 = sdiv.u32.pop %s310, 13
                %s440 = srem.u32.pop %s310, 13
                %s441 = smul.u32 %s439, 13
                %s442 = smul.u32 8, %s441
                %s443 = scalar_lea.vmem %s303, %s442 [#allocation2]
                %s444 = smul.u32 8, %s441
                %s445 = scalar_lea.vmem %s314, %s444
                // While loop
                $region66: #{tpu_custom_call.1} parent=57 // loop_pre_header
                  _
                $region67: #{tpu_custom_call.1} parent=57 // loop_header
                  %s447 = sphi 0, %s449
                  %p448 = scmp.ge.s32.totalorder %s447, %s440
                  %s452 = sphi 0, %s459
                  %s453 = sphi %s443, %s462
                  %s454 = sphi %s445, %s463
                $region68: #{tpu_custom_call.1} parent=57 // loop_header_branch
                  %451 = sbr.rel (%p448) target = $region72
                $region69: #{tpu_custom_call.1} parent=57 // loop_body
                  %v455 = vld [vmem:[%s453] sm:$0xff]
                  %456 = vst [vmem:[%s454] sm:$0xff] %v455
                  %s457 = sadd.s32 1, %s452
                  %p458 = scmp.ge.s32.totalorder %s457, %s440
                  %s459 = scalar_select %p458, 0, %s457
                  %s460 = smul.u32 %s459, 8
                  %s461 = smul.u32 %s459, 8
                  %s462 = scalar_lea.vmem %s443, %s460 [#allocation2]
                  %s463 = scalar_lea.vmem %s445, %s461
                $region70: #{tpu_custom_call.1} parent=57 // loop_footer
                  %s449 = sadd.s32 %s447, 1
                $region71: #{tpu_custom_call.1} parent=57 // loop_footer_branch
                  %446 = sbr.rel target = $region67
                $region72: #{tpu_custom_call.1} parent=57 // loop_exit
                  _
              $region58: #{tpu_custom_call.1} parent=35 // pred_fallthru
                _
              // Predicated region
              $region73: #{tpu_custom_call.1} parent=35 // pred_check
                _
              $region74: #{tpu_custom_call.1} parent=35 // pred_check_branch
                %465 = sbr.rel target = $region76
              $region75: #{tpu_custom_call.1} parent=35 // pred_region
                _
              $region76: #{tpu_custom_call.1} parent=35 // pred_fallthru
                _
            $region36: #{tpu_custom_call.1} parent=31 // pred_fallthru
              _
            // Predicated region
            $region37: #{tpu_custom_call.1} parent=31 // pred_check
              _
            $region38: #{tpu_custom_call.1} parent=31 // pred_check_branch
              %321 = sbr.rel target = $region40
            $region39: #{tpu_custom_call.1} parent=31 // pred_region
              %s323 = ssub.s32 256, 1
              %s324 = sdiv.u32.pop %s310, 13
              %s325 = srem.u32.pop %s310, 13
              // While loop
              $region41: #{tpu_custom_call.1} parent=39 // loop_pre_header
                _
              $region42: #{tpu_custom_call.1} parent=39 // loop_header
                %s327 = sphi 0, %s329
                %p328 = scmp.ge.s32.totalorder %s327, %s324
                %s332 = sphi 0, %s363
                %s333 = sphi %s303, %s366
                %s334 = sphi %s314, %s367
              $region43: #{tpu_custom_call.1} parent=39 // loop_header_branch
                %331 = sbr.rel (%p328) target = $region47
              $region44: #{tpu_custom_call.1} parent=39 // loop_body
                %v335 = vld [vmem:[%s333] sm:%s323]
                %336 = vst [vmem:[%s334] sm:%s323] %v335
                %v337 = vld [vmem:[%s333 + $0x8] sm:%s323]
                %338 = vst [vmem:[%s334 + $0x8] sm:%s323] %v337
                %v339 = vld [vmem:[%s333 + $0x10] sm:%s323]
                %340 = vst [vmem:[%s334 + $0x10] sm:%s323] %v339
                %v341 = vld [vmem:[%s333 + $0x18] sm:%s323]
                %342 = vst [vmem:[%s334 + $0x18] sm:%s323] %v341
                %v343 = vld [vmem:[%s333 + $0x20] sm:%s323]
                %344 = vst [vmem:[%s334 + $0x20] sm:%s323] %v343
                %v345 = vld [vmem:[%s333 + $0x28] sm:%s323]
                %346 = vst [vmem:[%s334 + $0x28] sm:%s323] %v345
                %v347 = vld [vmem:[%s333 + $0x30] sm:%s323]
                %348 = vst [vmem:[%s334 + $0x30] sm:%s323] %v347
                %v349 = vld [vmem:[%s333 + $0x38] sm:%s323]
                %350 = vst [vmem:[%s334 + $0x38] sm:%s323] %v349
                %v351 = vld [vmem:[%s333 + $0x40] sm:%s323]
                %352 = vst [vmem:[%s334 + $0x40] sm:%s323] %v351
                %v353 = vld [vmem:[%s333 + $0x48] sm:%s323]
                %354 = vst [vmem:[%s334 + $0x48] sm:%s323] %v353
                %v355 = vld [vmem:[%s333 + $0x50] sm:%s323]
                %356 = vst [vmem:[%s334 + $0x50] sm:%s323] %v355
                %v357 = vld [vmem:[%s333 + $0x58] sm:%s323]
                %358 = vst [vmem:[%s334 + $0x58] sm:%s323] %v357
                %v359 = vld [vmem:[%s333 + $0x60] sm:%s323]
                %360 = vst [vmem:[%s334 + $0x60] sm:%s323] %v359
                %s361 = sadd.s32 1, %s332
                %p362 = scmp.ge.s32.totalorder %s361, %s324
                %s363 = scalar_select %p362, 0, %s361
                %s364 = smul.u32 %s363, 104
                %s365 = smul.u32 %s363, 104
                %s366 = scalar_lea.vmem %s303, %s364 [#allocation2]
                %s367 = scalar_lea.vmem %s314, %s365
              $region45: #{tpu_custom_call.1} parent=39 // loop_footer
                %s329 = sadd.s32 %s327, 1
              $region46: #{tpu_custom_call.1} parent=39 // loop_footer_branch
                %326 = sbr.rel target = $region42
              $region47: #{tpu_custom_call.1} parent=39 // loop_exit
                _
              %s368 = sdiv.u32.pop %s310, 13
              %s369 = srem.u32.pop %s310, 13
              %s370 = smul.u32 %s368, 13
              %s371 = smul.u32 8, %s370
              %s372 = scalar_lea.vmem %s303, %s371 [#allocation2]
              %s373 = smul.u32 8, %s370
              %s374 = scalar_lea.vmem %s314, %s373
              // While loop
              $region48: #{tpu_custom_call.1} parent=39 // loop_pre_header
                _
              $region49: #{tpu_custom_call.1} parent=39 // loop_header
                %s376 = sphi 0, %s378
                %p377 = scmp.ge.s32.totalorder %s376, %s369
                %s381 = sphi 0, %s388
                %s382 = sphi %s372, %s391
                %s383 = sphi %s374, %s392
              $region50: #{tpu_custom_call.1} parent=39 // loop_header_branch
                %380 = sbr.rel (%p377) target = $region54
              $region51: #{tpu_custom_call.1} parent=39 // loop_body
                %v384 = vld [vmem:[%s382] sm:%s323]
                %385 = vst [vmem:[%s383] sm:%s323] %v384
                %s386 = sadd.s32 1, %s381
                %p387 = scmp.ge.s32.totalorder %s386, %s369
                %s388 = scalar_select %p387, 0, %s386
                %s389 = smul.u32 %s388, 8
                %s390 = smul.u32 %s388, 8
                %s391 = scalar_lea.vmem %s372, %s389 [#allocation2]
                %s392 = scalar_lea.vmem %s374, %s390
              $region52: #{tpu_custom_call.1} parent=39 // loop_footer
                %s378 = sadd.s32 %s376, 1
              $region53: #{tpu_custom_call.1} parent=39 // loop_footer_branch
                %375 = sbr.rel target = $region49
              $region54: #{tpu_custom_call.1} parent=39 // loop_exit
                _
            $region40: #{tpu_custom_call.1} parent=31 // pred_fallthru
              _
          $region32: #{tpu_custom_call.1} parent=27 // pred_fallthru
            _
          %466 = vnop
        $region28: #{tpu_custom_call.1} parent=23 // pred_fallthru
          _
      $region24: #{tpu_custom_call.1} parent=5 // pred_fallthru
        _
      %p467 = scmp.le.s32.totalorder 2, %s7
      // Predicated region
      $region77: #{tpu_custom_call.1} parent=5 // pred_check
        %p468 = pneg %p467
      $region78: #{tpu_custom_call.1} parent=5 // pred_check_branch
        %470 = sbr.rel (%p468) target = $region80
      $region79: #{tpu_custom_call.1} parent=5 // pred_region
        %s471 = ssub.s32 %s7, 2
        // Predicated region
        $region81: #{tpu_custom_call.1} parent=79 // pred_check
          %p472 = pneg %p62
        $region82: #{tpu_custom_call.1} parent=79 // pred_check_branch
          %474 = sbr.rel (%p472) target = $region84
        $region83: #{tpu_custom_call.1} parent=79 // pred_region
          %s475 = sand.u32 %s47, 1
          %s476 = sand.u32 %s47, 1
          %s477 = smul.addr %s476, 104
          %s478 = scalar_lea.vmem [#allocation2], %s477
        $region84: #{tpu_custom_call.1} parent=79 // pred_fallthru
          _
      $region80: #{tpu_custom_call.1} parent=5 // pred_fallthru
        _
    $region6: #{tpu_custom_call.1} parent=1 // loop_footer
      %s11 = sadd.s32 1, %s7
    $region7: #{tpu_custom_call.1} parent=1 // loop_footer_branch
      %6 = sbr.rel target = $region3
    $region8: #{tpu_custom_call.1} parent=1 // loop_exit
      _

</llo_original>
